<compile_context>
chip_gen: v6e
topology: v6e:2x2x1
jax: 0.10.0
libtpu: 0.0.40
codegen_flags: <defaults>
</compile_context>

<pallas_src>
import jax
import jax.numpy as jnp
from jax.experimental import pallas as pl
from jax.experimental.pallas import tpu as pltpu


def _active_embed_kernel(x_ref, w_ref, b_ref, o_ref):
    # x_ref: (tm, F)       folded input rows
    # w_ref: (F, OUT)      row f holds w[e] in lane group f (f*E <= lane < (f+1)*E), 0 elsewhere
    # b_ref: (1, OUT)      bias tiled across lane groups (or zero-padded for padded E)
    # o_ref: (tm, OUT)     OUT is a multiple of 128 -> unmasked 128-lane stores
    #
    # out[r, f*E + e] = sin(x[r, f] * w[e] + bias[e])
    F = x_ref.shape[1]
    x = x_ref[...].astype(jnp.float32)
    acc = x[:, 0:1] * w_ref[0:1, :].astype(jnp.float32)
    for f in range(1, F):          # static, tiny (F = 128 // E, typically 1 or 2)
        acc = acc + x[:, f:f + 1] * w_ref[f:f + 1, :].astype(jnp.float32)
    acc = acc + b_ref[...].astype(jnp.float32)
    o_ref[...] = jnp.sin(acc).astype(o_ref.dtype)   # EUP/VPU sin, cast only at store


def _pick_tile_rows(rows, out_cols, target_out_bytes=4 << 20):
    # ~4 MiB f32 output per grid step (tm = 8192 at out_cols = 128).  Double
    # buffered footprint: out 2*tm*out_cols*4 plus input blocks that pad to 128
    # lanes (2*tm*512 B) -> ~16 MiB total, under the 32 MiB limit we request and
    # well under v7x's 64 MiB physical VMEM per TC.
    tm = target_out_bytes // (out_cols * 4)
    tm = max(16, (tm // 16) * 16)       # multiple of 16 (bf16 sublane tile)
    return rows if rows <= tm else tm   # full-extent block is always legal


def active_embed(x, conv_weight, conv_bias):
    """x: (B, 1, L). conv_weight: (E, 1, 1). conv_bias: (E,). Returns (B, L, E)."""
    B, C, L = x.shape
    assert C == 1, "ActiveEmbed expects a single input channel"
    E = conv_weight.shape[0]
    M = B * L
    out_dtype = x.dtype

    w32 = conv_weight.reshape(E).astype(jnp.float32)
    b32 = conv_bias.reshape(E).astype(jnp.float32)

    if E < 128 and 128 % E == 0:
        # Fold F rows per 128-lane output row (lane-dense stores for small E).
        F = 128 // E
        out_cols = 128
        # Block-diagonal expanded weight: w_exp[f, f*E + e] = w[e].
        w_exp = (jnp.eye(F, dtype=jnp.float32)[:, :, None]
                 * w32[None, None, :]).reshape(F, out_cols)
        b_exp = jnp.tile(b32[None, :], (1, F))
    else:
        # E already >= 128 (or a non-divisor): pad E up to a multiple of 128 so
        # the out_spec stays lane-dense; padded lanes are sliced off afterwards.
        F = 1
        out_cols = -(-E // 128) * 128
        w_exp = jnp.zeros((1, out_cols), jnp.float32).at[0, :E].set(w32)
        b_exp = jnp.zeros((1, out_cols), jnp.float32).at[0, :E].set(b32)

    # Zero-pad M up to a multiple of F so the folded path never degrades to a
    # masked sub-128-lane store path.
    rows = -(-M // F)
    M_pad = rows * F
    x_flat = x.reshape(M)
    if M_pad != M:
        x_flat = jnp.pad(x_flat, (0, M_pad - M))
    xin = x_flat.reshape(rows, F)

    tm = _pick_tile_rows(rows, out_cols)
    grid = (pl.cdiv(rows, tm),)    # ragged edge block is masked by Pallas

    out = pl.pallas_call(
        _active_embed_kernel,
        out_shape=jax.ShapeDtypeStruct((rows, out_cols), out_dtype),
        grid_spec=pl.GridSpec(
            grid=grid,
            in_specs=[
                pl.BlockSpec((tm, F), lambda i: (i, 0)),
                pl.BlockSpec((F, out_cols), lambda i: (0, 0)),  # VMEM-resident weight
                pl.BlockSpec((1, out_cols), lambda i: (0, 0)),  # VMEM-resident bias
            ],
            # TODO(synk): if a v7x bundle/trace shows exposed output-DMA waits,
            # add pipeline_mode=pl.Buffered(3) here (budget vs 64 MiB VMEM).
            out_specs=pl.BlockSpec((tm, out_cols), lambda i: (i, 0)),
        ),
        compiler_params=pltpu.CompilerParams(
            dimension_semantics=("parallel",),       # megacore sharding on v7x
            vmem_limit_bytes=32 * 1024 * 1024,       # 2*(4 MiB out + 4 MiB padded in) + weights
        ),
        cost_estimate=pl.CostEstimate(
            flops=(2 * F + 1) * rows * out_cols,
            transcendentals=rows * out_cols,
            bytes_accessed=4 * (M_pad + (F + 1) * out_cols + rows * out_cols),
        ),
    )(xin, w_exp, b_exp)

    # Free row-major views / cheap slices: (rows, F*E) -> (M_pad, E|E_pad) -> (M, E) -> (B, L, E).
    out = out.reshape(M_pad, out_cols // F)[:M, :E]
    return out.reshape(B, L, E)


def _reference(x, conv_weight, conv_bias):
    return jnp.sin(
        x[:, 0, :, None] * conv_weight[:, 0, 0][None, None, :]
        + conv_bias[None, None, :]
    )


if __name__ == "__main__":
    key = jax.random.PRNGKey(0)
    kx, kw, kb, kx2 = jax.random.split(key, 4)

    # Module defaults: rec_len=25, embed_dim=64 (Conv1d(1, E, kernel_size=1)).
    E = 64
    conv_weight = jax.random.normal(kw, (E, 1, 1), dtype=jnp.float32) * 0.1
    conv_bias = jax.random.normal(kb, (E,), dtype=jnp.float32) * 0.1

    # Test 1: small module-default shape (single block, folded F=2 path).
    B, L = 2, 25
    x = jax.random.normal(kx, (B, 1, L), dtype=jnp.float32)
    out = jax.block_until_ready(active_embed(x, conv_weight, conv_bias))
    ref = _reference(x, conv_weight, conv_bias)
    assert out.shape == (B, L, E)
    assert jnp.allclose(out, ref, atol=1e-5, rtol=1e-5)

    # Test 2: odd M (exercises row zero-padding) and rows > tile (multi-step grid
    # with a ragged edge block): M = 5*3277 = 16385 -> rows = 8193, grid = (2,).
    B2, L2 = 5, 3277
    x2 = jax.random.normal(kx2, (B2, 1, L2), dtype=jnp.float32)
    out2 = jax.block_until_ready(active_embed(x2, conv_weight, conv_bias))
    ref2 = _reference(x2, conv_weight, conv_bias)
    assert out2.shape == (B2, L2, E)
    assert jnp.allclose(out2, ref2, atol=1e-5, rtol=1e-5)

    print("KERNEL_OK")
</pallas_src>

<mosaic_0001>
module attributes {stable_mosaic.version = 11 : i64} {
  func.func @_active_embed_kernel(%arg0: i32, %arg1: memref<25x2xf32, #tpu.memory_space<vmem>>, %arg2: memref<2x128xf32, #tpu.memory_space<vmem>>, %arg3: memref<1x128xf32, #tpu.memory_space<vmem>>, %arg4: memref<25x128xf32, #tpu.memory_space<vmem>>) attributes {dimension_semantics = [#tpu.dimension_semantics<parallel>], iteration_bounds = array<i64: 1>, scalar_prefetch = 0 : i64, scratch_operands = 0 : i64, tpu.core_type = #tpu.core_type<tc>, window_params = [{transform_indices = @transform_0, window_bounds = array<i64: 25, 2>}, {pipeline_mode = #tpu.pipeline_mode<synchronous>, transform_indices = @transform_1, window_bounds = array<i64: 2, 128>}, {pipeline_mode = #tpu.pipeline_mode<synchronous>, transform_indices = @transform_2, window_bounds = array<i64: 1, 128>}, {transform_indices = @transform_3, window_bounds = array<i64: 25, 128>}]} {
    %c0 = arith.constant 0 : index
    %c0_0 = arith.constant 0 : index
    %0 = vector.load %arg1[%c0, %c0_0] : memref<25x2xf32, #tpu.memory_space<vmem>>, vector<25x2xf32>
    %1 = vector.extract_strided_slice %0 {offsets = [0, 0], sizes = [25, 1], strides = [1, 1]} : vector<25x2xf32> to vector<25x1xf32>
    %c0_1 = arith.constant 0 : index
    %c0_2 = arith.constant 0 : index
    %2 = vector.load %arg2[%c0_1, %c0_2] : memref<2x128xf32, #tpu.memory_space<vmem>>, vector<1x128xf32>
    %3 = vector.broadcast %1 : vector<25x1xf32> to vector<25x128xf32>
    %4 = vector.broadcast %2 : vector<1x128xf32> to vector<25x128xf32>
    %5 = arith.mulf %3, %4 : vector<25x128xf32>
    %6 = vector.extract_strided_slice %0 {offsets = [0, 1], sizes = [25, 1], strides = [1, 1]} : vector<25x2xf32> to vector<25x1xf32>
    %c1 = arith.constant 1 : index
    %c0_3 = arith.constant 0 : index
    %7 = vector.load %arg2[%c1, %c0_3] : memref<2x128xf32, #tpu.memory_space<vmem>>, vector<1x128xf32>
    %8 = vector.broadcast %6 : vector<25x1xf32> to vector<25x128xf32>
    %9 = vector.broadcast %7 : vector<1x128xf32> to vector<25x128xf32>
    %10 = arith.mulf %8, %9 : vector<25x128xf32>
    %11 = arith.addf %5, %10 : vector<25x128xf32>
    %c0_4 = arith.constant 0 : index
    %c0_5 = arith.constant 0 : index
    %12 = vector.load %arg3[%c0_4, %c0_5] : memref<1x128xf32, #tpu.memory_space<vmem>>, vector<1x128xf32>
    %13 = vector.broadcast %12 : vector<1x128xf32> to vector<25x128xf32>
    %14 = arith.addf %11, %13 : vector<25x128xf32>
    %15 = math.sin %14 : vector<25x128xf32>
    %c0_6 = arith.constant 0 : index
    %c0_7 = arith.constant 0 : index
    %16 = vector.load %arg4[%c0_6, %c0_7] : memref<25x128xf32, #tpu.memory_space<vmem>>, vector<25x128xf32>
    tpu.vector_store %arg4[%c0_6, %c0_7], %15 {strides = array<i32>} : memref<25x128xf32, #tpu.memory_space<vmem>>, vector<25x128xf32>,
    return
  }
  func.func @transform_0(%arg0: i32) -> (i32, i32) {
    %c0_i32 = arith.constant 0 : i32
    %c0_i32_0 = arith.constant 0 : i32
    return %arg0, %c0_i32 : i32, i32
  }
  func.func @transform_1(%arg0: i32) -> (i32, i32) {
    %c0_i32 = arith.constant 0 : i32
    %c0_i32_0 = arith.constant 0 : i32
    %c0_i32_1 = arith.constant 0 : i32
    return %c0_i32, %c0_i32_0 : i32, i32
  }
  func.func @transform_2(%arg0: i32) -> (i32, i32) {
    %c0_i32 = arith.constant 0 : i32
    %c0_i32_0 = arith.constant 0 : i32
    %c0_i32_1 = arith.constant 0 : i32
    return %c0_i32, %c0_i32_0 : i32, i32
  }
  func.func @transform_3(%arg0: i32) -> (i32, i32) {
    %c0_i32 = arith.constant 0 : i32
    %c0_i32_0 = arith.constant 0 : i32
    return %arg0, %c0_i32 : i32, i32
  }
}

</mosaic_0001>

<llo_original>
// kernel: tpu_custom_call.1
$region0: #{tpu_custom_call.1}
  #allocation0 [shape = 'u32[]', space=smem, size = 0x4, offset = 0x4, fixed_abs, tag = 'smem constant byte address 0x4 - core index']
  #allocation1 [shape = 'u32[144,128]{1,0:T(1,128)}', space=vmem, size = 0x12000, scoped, tag = 'internal scratch']
  %s0 = inlined_call_operand.vmem [shape: f32[25,2], index: 0, kind: input, shape index: {}]
  %s1 = inlined_call_operand.vmem [shape: f32[2,128], index: 1, kind: input, shape index: {}]
  %s2 = inlined_call_operand.vmem [shape: f32[1,128], index: 2, kind: input, shape index: {}]
  %s3 = inlined_call_operand.hbm [shape: f32[25,128], index: 3, kind: output, shape index: {}]
  %s4 = sld [smem:[#allocation0]]
  $region22: #{tpu_custom_call.1} parent=0
    _
  %s6 = ssub.s32 1, %s4
  %s7 = scalar_select 0, %s6, %s4
  $region1: #{tpu_custom_call.1} parent=0
    #allocation2 [shape = 'u8[16384]{0}', space=vmem, size = 0x4000, scoped, tag = 'output window, operand 0, single buffered']
    #allocation3 [shape = 's32[1]{0}', space=sflag, size = 0x4, scoped, tag = 'scoped memory for tpu_custom_call.1']
    %8 = vsyncpa [#allocation3], 0
    // Predicated region
    $region2: #{tpu_custom_call.1} parent=1 // pred_check
      _
    $region3: #{tpu_custom_call.1} parent=1 // pred_check_branch
      %10 = sbr.rel (0) target = $region5
    $region4: #{tpu_custom_call.1} parent=1 // pred_region
      _
    $region5: #{tpu_custom_call.1} parent=1 // pred_fallthru
      _
    // Predicated region
    $region6: #{tpu_custom_call.1} parent=1 // pred_check
      _
    $region7: #{tpu_custom_call.1} parent=1 // pred_check_branch
      %12 = sbr.rel (0) target = $region9
    $region8: #{tpu_custom_call.1} parent=1 // pred_region
      _
    $region9: #{tpu_custom_call.1} parent=1 // pred_fallthru
      _
    // Predicated region
    $region10: #{tpu_custom_call.1} parent=1 // pred_check
      _
    $region11: #{tpu_custom_call.1} parent=1 // pred_check_branch
      %14 = sbr.rel (0) target = $region13
    $region12: #{tpu_custom_call.1} parent=1 // pred_region
      _
    $region13: #{tpu_custom_call.1} parent=1 // pred_fallthru
      _
    %v15 = vld [vmem:[%s0] sm:$0xff]
    %v16 = vld [vmem:[%s0 + $0x8] sm:$0xff]
    %v17 = vld [vmem:[%s0 + $0x10] sm:$0xff]
    %v18 = vld [vmem:[%s0 + $0x18] sm:$0x1]
    %v19 = vld [vmem:[%s1] sm:$0x1]
    %21 = vset.pattern.permute.xlu0 0
    %22 = vperm.xlu0 %21, %v15
    %v23 = vpop.permute.xlu0 %22
    %26 = vset.pattern.permute.xlu0 0
    %27 = vperm.xlu0 %26, %v16
    %v28 = vpop.permute.xlu0 %27
    %31 = vset.pattern.permute.xlu0 0
    %32 = vperm.xlu0 %31, %v17
    %v33 = vpop.permute.xlu0 %32
    %36 = vset.pattern.permute.xlu0 0
    %37 = vperm.xlu0 %36, %v18
    %v38 = vpop.permute.xlu0 %37
    %v40 = vlaneseq
    %v41 = vshrl.u32 %v40, 7
    %v42 = vsub.s32 0, %v41
    %v43 = vrot.slane %v19, %v42
    %v44 = vmul.f32 %v23, %v43
    %v45 = vmul.f32 %v28, %v43
    %v46 = vmul.f32 %v33, %v43
    %v47 = vmul.f32 %v38, %v43
    %v48 = vld [vmem:[%s1 + $0x1] sm:$0x1]
    %49 = vset.pattern.permute.xlu0 1
    %50 = vperm.xlu0 %49, %v15
    %v51 = vpop.permute.xlu0 %50
    %53 = vset.pattern.permute.xlu0 1
    %54 = vperm.xlu0 %53, %v16
    %v55 = vpop.permute.xlu0 %54
    %57 = vset.pattern.permute.xlu0 1
    %58 = vperm.xlu0 %57, %v17
    %v59 = vpop.permute.xlu0 %58
    %61 = vset.pattern.permute.xlu0 1
    %62 = vperm.xlu0 %61, %v18
    %v63 = vpop.permute.xlu0 %62
    %v65 = vlaneseq
    %v66 = vshrl.u32 %v65, 7
    %v67 = vsub.s32 0, %v66
    %v68 = vrot.slane %v48, %v67
    %v69 = vmul.f32 %v51, %v68
    %v70 = vmul.f32 %v55, %v68
    %v71 = vmul.f32 %v59, %v68
    %v72 = vmul.f32 %v63, %v68
    %v73 = vadd.f32 %v44, %v69
    %v74 = vadd.f32 %v45, %v70
    %v75 = vadd.f32 %v46, %v71
    %v76 = vadd.f32 %v47, %v72
    %v77 = vld [vmem:[%s2] sm:$0x1]
    %v79 = vlaneseq
    %v80 = vshrl.u32 %v79, 7
    %v81 = vsub.s32 0, %v80
    %v82 = vrot.slane %v77, %v81
    %v84 = vadd.f32 %v73, %v82
    %v85 = vadd.f32 %v74, %v82
    %v86 = vadd.f32 %v75, %v82
    %v87 = vadd.f32 %v76, %v82
    %v88 = vand.u32 2147483647, %v84
    %vm89 = vcmp.le.f32.partialorder %v88, 0.7853982
    %vm90 = vcmp.lt.s32.totalorder %v84, 0
    %v91 = vand.u32 %v84, 2139095040
    %v92 = vshrl.u32 %v91, 23
    %v93 = vsub.s32 %v92, 127
    %v94 = vand.u32 2147483647, %v84
    %v95 = vand.u32 %v94, 8388607
    %v96 = vor.u32 %v95, 8388608
    %v97 = vsub.s32 0, %v96
    %v98 = vadd.s32 %v93, 1
    %vm99 = vcmp.gt.s32.totalorder %v98, 0
    %v100 = vsel %vm99, %v98, 0
    %v101 = vshrl.u32 %v100, 5
    %v102 = vand.u32 %v100, 31
    %v103 = vsub.s32 32, %v102
    %v104 = vshrl.u32 683565275, %v103
    %v105 = vshll.u32 683565275, %v102
    %v106 = vshrl.u32 2475754826, %v103
    %v107 = vor.u32 %v105, %v106
    %v108 = vshll.u32 2475754826, %v102
    %v109 = vshrl.u32 2131351028, %v103
    %v110 = vor.u32 %v108, %v109
    %v111 = vshll.u32 2131351028, %v102
    %v112 = vshrl.u32 2102212464, %v103
    %v113 = vor.u32 %v111, %v112
    %v114 = vshll.u32 2102212464, %v102
    %v115 = vshrl.u32 920167782, %v103
    %v116 = vor.u32 %v114, %v115
    %v117 = vshll.u32 920167782, %v102
    %v118 = vshrl.u32 1326507024, %v103
    %v119 = vor.u32 %v117, %v118
    %vm120 = vcmp.lt.s32.totalorder %v101, 1
    %vm121 = vcmp.lt.s32.totalorder %v101, 2
    %vm122 = vcmp.lt.s32.totalorder %v101, 3
    %vm123 = vcmp.lt.s32.totalorder %v101, 4
    %v124 = vsel %vm120, %v104, %v107
    %v125 = vsel %vm123, %v113, 2102212464
    %v126 = vsel %vm122, %v110, %v125
    %v127 = vsel %vm121, %v124, %v126
    %v128 = vsel %vm120, %v107, %v110
    %v129 = vsel %vm123, %v116, 920167782
    %v130 = vsel %vm122, %v113, %v129
    %v131 = vsel %vm121, %v128, %v130
    %v132 = vsel %vm120, %v110, %v113
    %v133 = vsel %vm123, %v119, 1326507024
    %v134 = vsel %vm122, %v116, %v133
    %v135 = vsel %vm121, %v132, %v134
    %v136 = vshll.u32 %v96, 8
    %v137 = vmul.u32.u64.compose %v136, %v135
    %v138 = vextract.low.u32 %v137
    %v139 = vextract.high.u32 %v137
    %v140 = vmul.u32.u64.compose %v136, %v131
    %v141 = vextract.low.u32 %v140
    %v142 = vextract.high.u32 %v140
    %v143 = vmul.u32 %v136, %v127
    %v144 = vadd.s32 %v139, %v141
    %vm145 = vc.u32 %v139, %v141
    %v146 = vadd.s32 %v142, 1
    %v147 = vsel %vm145, %v146, %v142
    %v148 = vadd.s32 %v143, %v147
    %v149 = vadd.s32 %v148, 536870912
    %v150 = vshrl.u32 %v149, 30
    %v151 = vshll.u32 %v150, 30
    %v152 = vsub.s32 %v148, %v151
    %vm153 = vcmp.lt.s32.totalorder %v152, 0
    %v154 = vsub.s32 0, %v152
    %v155 = vsel %vm153, %v154, %v152
    %v156 = vclz %v155
    %v157 = vsub.s32 %v156, 2
    %vm158 = vcmp.gt.s32.totalorder 0, %v157
    %v159 = vsel %vm158, 0, %v157
    %v160 = vsub.s32 32, %v159
    %v161 = vshll.u32 %v152, %v159
    %v162 = vshrl.u32 %v144, %v160
    %v163 = vor.u32 %v161, %v162
    %v164 = vsub.s32 4294967266, %v159
    %v165 = vadd.s32 %v164, 127
    %v166 = vshll.u32 %v165, 23
    %v167 = vor.u32 4788187, %v166
    %v168 = vand.u32 2147483647, %v167
    %v170 = vcvt.s32.f32 %v163
    %v171 = vmul.f32 %v170, %v168
    %v172 = vxor.u32 %v171, 2147483648
    %v173 = vsel %vm90, %v172, %v171
    %v174 = vsub.s32 4, %v150
    %v175 = vsel %vm90, %v174, %v150
    %v176 = vsel %vm89, %v84, %v173
    %v177 = vsel %vm89, 0, %v175
    %v178 = vcosq.f32.pop %v176
    %v179 = vsinq.f32.pop %v176
    %vm180 = vweird.f32 %v84
    %v181 = vadd.s32 %v177, 3
    %v182 = vand.u32 %v181, 3
    %vm183 = vcmp.lt.s32.totalorder %v182, 2
    %vm184 = vcmp.eq.s32.totalorder %v182, 0
    %v185 = vxor.u32 %v179, 2147483648
    %v186 = vsel %vm184, %v178, %v185
    %vm187 = vcmp.eq.s32.totalorder %v182, 2
    %v188 = vxor.u32 %v178, 2147483648
    %v189 = vsel %vm187, %v188, %v179
    %v190 = vsel %vm183, %v186, %v189
    %v191 = vsel %vm180, nan, %v190
    %v192 = vand.u32 2147483647, %v85
    %vm193 = vcmp.le.f32.partialorder %v192, 0.7853982
    %vm194 = vcmp.lt.s32.totalorder %v85, 0
    %v195 = vand.u32 %v85, 2139095040
    %v196 = vshrl.u32 %v195, 23
    %v197 = vsub.s32 %v196, 127
    %v198 = vand.u32 2147483647, %v85
    %v199 = vand.u32 %v198, 8388607
    %v200 = vor.u32 %v199, 8388608
    %v201 = vsub.s32 0, %v200
    %v202 = vadd.s32 %v197, 1
    %vm203 = vcmp.gt.s32.totalorder %v202, 0
    %v204 = vsel %vm203, %v202, 0
    %v205 = vshrl.u32 %v204, 5
    %v206 = vand.u32 %v204, 31
    %v207 = vsub.s32 32, %v206
    %v208 = vshrl.u32 683565275, %v207
    %v209 = vshll.u32 683565275, %v206
    %v210 = vshrl.u32 2475754826, %v207
    %v211 = vor.u32 %v209, %v210
    %v212 = vshll.u32 2475754826, %v206
    %v213 = vshrl.u32 2131351028, %v207
    %v214 = vor.u32 %v212, %v213
    %v215 = vshll.u32 2131351028, %v206
    %v216 = vshrl.u32 2102212464, %v207
    %v217 = vor.u32 %v215, %v216
    %v218 = vshll.u32 2102212464, %v206
    %v219 = vshrl.u32 920167782, %v207
    %v220 = vor.u32 %v218, %v219
    %v221 = vshll.u32 920167782, %v206
    %v222 = vshrl.u32 1326507024, %v207
    %v223 = vor.u32 %v221, %v222
    %vm224 = vcmp.lt.s32.totalorder %v205, 1
    %vm225 = vcmp.lt.s32.totalorder %v205, 2
    %vm226 = vcmp.lt.s32.totalorder %v205, 3
    %vm227 = vcmp.lt.s32.totalorder %v205, 4
    %v228 = vsel %vm224, %v208, %v211
    %v229 = vsel %vm227, %v217, 2102212464
    %v230 = vsel %vm226, %v214, %v229
    %v231 = vsel %vm225, %v228, %v230
    %v232 = vsel %vm224, %v211, %v214
    %v233 = vsel %vm227, %v220, 920167782
    %v234 = vsel %vm226, %v217, %v233
    %v235 = vsel %vm225, %v232, %v234
    %v236 = vsel %vm224, %v214, %v217
    %v237 = vsel %vm227, %v223, 1326507024
    %v238 = vsel %vm226, %v220, %v237
    %v239 = vsel %vm225, %v236, %v238
    %v240 = vshll.u32 %v200, 8
    %v241 = vmul.u32.u64.compose %v240, %v239
    %v242 = vextract.low.u32 %v241
    %v243 = vextract.high.u32 %v241
    %v244 = vmul.u32.u64.compose %v240, %v235
    %v245 = vextract.low.u32 %v244
    %v246 = vextract.high.u32 %v244
    %v247 = vmul.u32 %v240, %v231
    %v248 = vadd.s32 %v243, %v245
    %vm249 = vc.u32 %v243, %v245
    %v250 = vadd.s32 %v246, 1
    %v251 = vsel %vm249, %v250, %v246
    %v252 = vadd.s32 %v247, %v251
    %v253 = vadd.s32 %v252, 536870912
    %v254 = vshrl.u32 %v253, 30
    %v255 = vshll.u32 %v254, 30
    %v256 = vsub.s32 %v252, %v255
    %vm257 = vcmp.lt.s32.totalorder %v256, 0
    %v258 = vsub.s32 0, %v256
    %v259 = vsel %vm257, %v258, %v256
    %v260 = vclz %v259
    %v261 = vsub.s32 %v260, 2
    %vm262 = vcmp.gt.s32.totalorder 0, %v261
    %v263 = vsel %vm262, 0, %v261
    %v264 = vsub.s32 32, %v263
    %v265 = vshll.u32 %v256, %v263
    %v266 = vshrl.u32 %v248, %v264
    %v267 = vor.u32 %v265, %v266
    %v268 = vsub.s32 4294967266, %v263
    %v269 = vadd.s32 %v268, 127
    %v270 = vshll.u32 %v269, 23
    %v271 = vor.u32 4788187, %v270
    %v272 = vand.u32 2147483647, %v271
    %v274 = vcvt.s32.f32 %v267
    %v275 = vmul.f32 %v274, %v272
    %v276 = vxor.u32 %v275, 2147483648
    %v277 = vsel %vm194, %v276, %v275
    %v278 = vsub.s32 4, %v254
    %v279 = vsel %vm194, %v278, %v254
    %v280 = vsel %vm193, %v85, %v277
    %v281 = vsel %vm193, 0, %v279
    %v282 = vcosq.f32.pop %v280
    %v283 = vsinq.f32.pop %v280
    %vm284 = vweird.f32 %v85
    %v285 = vadd.s32 %v281, 3
    %v286 = vand.u32 %v285, 3
    %vm287 = vcmp.lt.s32.totalorder %v286, 2
    %vm288 = vcmp.eq.s32.totalorder %v286, 0
    %v289 = vxor.u32 %v283, 2147483648
    %v290 = vsel %vm288, %v282, %v289
    %vm291 = vcmp.eq.s32.totalorder %v286, 2
    %v292 = vxor.u32 %v282, 2147483648
    %v293 = vsel %vm291, %v292, %v283
    %v294 = vsel %vm287, %v290, %v293
    %v295 = vsel %vm284, nan, %v294
    %v296 = vand.u32 2147483647, %v86
    %vm297 = vcmp.le.f32.partialorder %v296, 0.7853982
    %vm298 = vcmp.lt.s32.totalorder %v86, 0
    %v299 = vand.u32 %v86, 2139095040
    %v300 = vshrl.u32 %v299, 23
    %v301 = vsub.s32 %v300, 127
    %v302 = vand.u32 2147483647, %v86
    %v303 = vand.u32 %v302, 8388607
    %v304 = vor.u32 %v303, 8388608
    %v305 = vsub.s32 0, %v304
    %v306 = vadd.s32 %v301, 1
    %vm307 = vcmp.gt.s32.totalorder %v306, 0
    %v308 = vsel %vm307, %v306, 0
    %v309 = vshrl.u32 %v308, 5
    %v310 = vand.u32 %v308, 31
    %v311 = vsub.s32 32, %v310
    %v312 = vshrl.u32 683565275, %v311
    %v313 = vshll.u32 683565275, %v310
    %v314 = vshrl.u32 2475754826, %v311
    %v315 = vor.u32 %v313, %v314
    %v316 = vshll.u32 2475754826, %v310
    %v317 = vshrl.u32 2131351028, %v311
    %v318 = vor.u32 %v316, %v317
    %v319 = vshll.u32 2131351028, %v310
    %v320 = vshrl.u32 2102212464, %v311
    %v321 = vor.u32 %v319, %v320
    %v322 = vshll.u32 2102212464, %v310
    %v323 = vshrl.u32 920167782, %v311
    %v324 = vor.u32 %v322, %v323
    %v325 = vshll.u32 920167782, %v310
    %v326 = vshrl.u32 1326507024, %v311
    %v327 = vor.u32 %v325, %v326
    %vm328 = vcmp.lt.s32.totalorder %v309, 1
    %vm329 = vcmp.lt.s32.totalorder %v309, 2
    %vm330 = vcmp.lt.s32.totalorder %v309, 3
    %vm331 = vcmp.lt.s32.totalorder %v309, 4
    %v332 = vsel %vm328, %v312, %v315
    %v333 = vsel %vm331, %v321, 2102212464
    %v334 = vsel %vm330, %v318, %v333
    %v335 = vsel %vm329, %v332, %v334
    %v336 = vsel %vm328, %v315, %v318
    %v337 = vsel %vm331, %v324, 920167782
    %v338 = vsel %vm330, %v321, %v337
    %v339 = vsel %vm329, %v336, %v338
    %v340 = vsel %vm328, %v318, %v321
    %v341 = vsel %vm331, %v327, 1326507024
    %v342 = vsel %vm330, %v324, %v341
    %v343 = vsel %vm329, %v340, %v342
    %v344 = vshll.u32 %v304, 8
    %v345 = vmul.u32.u64.compose %v344, %v343
    %v346 = vextract.low.u32 %v345
    %v347 = vextract.high.u32 %v345
    %v348 = vmul.u32.u64.compose %v344, %v339
    %v349 = vextract.low.u32 %v348
    %v350 = vextract.high.u32 %v348
    %v351 = vmul.u32 %v344, %v335
    %v352 = vadd.s32 %v347, %v349
    %vm353 = vc.u32 %v347, %v349
    %v354 = vadd.s32 %v350, 1
    %v355 = vsel %vm353, %v354, %v350
    %v356 = vadd.s32 %v351, %v355
    %v357 = vadd.s32 %v356, 536870912
    %v358 = vshrl.u32 %v357, 30
    %v359 = vshll.u32 %v358, 30
    %v360 = vsub.s32 %v356, %v359
    %vm361 = vcmp.lt.s32.totalorder %v360, 0
    %v362 = vsub.s32 0, %v360
    %v363 = vsel %vm361, %v362, %v360
    %v364 = vclz %v363
    %v365 = vsub.s32 %v364, 2
    %vm366 = vcmp.gt.s32.totalorder 0, %v365
    %v367 = vsel %vm366, 0, %v365
    %v368 = vsub.s32 32, %v367
    %v369 = vshll.u32 %v360, %v367
    %v370 = vshrl.u32 %v352, %v368
    %v371 = vor.u32 %v369, %v370
    %v372 = vsub.s32 4294967266, %v367
    %v373 = vadd.s32 %v372, 127
    %v374 = vshll.u32 %v373, 23
    %v375 = vor.u32 4788187, %v374
    %v376 = vand.u32 2147483647, %v375
    %v378 = vcvt.s32.f32 %v371
    %v379 = vmul.f32 %v378, %v376
    %v380 = vxor.u32 %v379, 2147483648
    %v381 = vsel %vm298, %v380, %v379
    %v382 = vsub.s32 4, %v358
    %v383 = vsel %vm298, %v382, %v358
    %v384 = vsel %vm297, %v86, %v381
    %v385 = vsel %vm297, 0, %v383
    %v386 = vcosq.f32.pop %v384
    %v387 = vsinq.f32.pop %v384
    %vm388 = vweird.f32 %v86
    %v389 = vadd.s32 %v385, 3
    %v390 = vand.u32 %v389, 3
    %vm391 = vcmp.lt.s32.totalorder %v390, 2
    %vm392 = vcmp.eq.s32.totalorder %v390, 0
    %v393 = vxor.u32 %v387, 2147483648
    %v394 = vsel %vm392, %v386, %v393
    %vm395 = vcmp.eq.s32.totalorder %v390, 2
    %v396 = vxor.u32 %v386, 2147483648
    %v397 = vsel %vm395, %v396, %v387
    %v398 = vsel %vm391, %v394, %v397
    %v399 = vsel %vm388, nan, %v398
    %v400 = vand.u32 2147483647, %v87
    %vm401 = vcmp.le.f32.partialorder %v400, 0.7853982
    %vm402 = vcmp.lt.s32.totalorder %v87, 0
    %v403 = vand.u32 %v87, 2139095040
    %v404 = vshrl.u32 %v403, 23
    %v405 = vsub.s32 %v404, 127
    %v406 = vand.u32 2147483647, %v87
    %v407 = vand.u32 %v406, 8388607
    %v408 = vor.u32 %v407, 8388608
    %v409 = vsub.s32 0, %v408
    %v410 = vadd.s32 %v405, 1
    %vm411 = vcmp.gt.s32.totalorder %v410, 0
    %v412 = vsel %vm411, %v410, 0
    %v413 = vshrl.u32 %v412, 5
    %v414 = vand.u32 %v412, 31
    %v415 = vsub.s32 32, %v414
    %v416 = vshrl.u32 683565275, %v415
    %v417 = vshll.u32 683565275, %v414
    %v418 = vshrl.u32 2475754826, %v415
    %v419 = vor.u32 %v417, %v418
    %v420 = vshll.u32 2475754826, %v414
    %v421 = vshrl.u32 2131351028, %v415
    %v422 = vor.u32 %v420, %v421
    %v423 = vshll.u32 2131351028, %v414
    %v424 = vshrl.u32 2102212464, %v415
    %v425 = vor.u32 %v423, %v424
    %v426 = vshll.u32 2102212464, %v414
    %v427 = vshrl.u32 920167782, %v415
    %v428 = vor.u32 %v426, %v427
    %v429 = vshll.u32 920167782, %v414
    %v430 = vshrl.u32 1326507024, %v415
    %v431 = vor.u32 %v429, %v430
    %vm432 = vcmp.lt.s32.totalorder %v413, 1
    %vm433 = vcmp.lt.s32.totalorder %v413, 2
    %vm434 = vcmp.lt.s32.totalorder %v413, 3
    %vm435 = vcmp.lt.s32.totalorder %v413, 4
    %v436 = vsel %vm432, %v416, %v419
    %v437 = vsel %vm435, %v425, 2102212464
    %v438 = vsel %vm434, %v422, %v437
    %v439 = vsel %vm433, %v436, %v438
    %v440 = vsel %vm432, %v419, %v422
    %v441 = vsel %vm435, %v428, 920167782
    %v442 = vsel %vm434, %v425, %v441
    %v443 = vsel %vm433, %v440, %v442
    %v444 = vsel %vm432, %v422, %v425
    %v445 = vsel %vm435, %v431, 1326507024
    %v446 = vsel %vm434, %v428, %v445
    %v447 = vsel %vm433, %v444, %v446
    %v448 = vshll.u32 %v408, 8
    %v449 = vmul.u32.u64.compose %v448, %v447
    %v450 = vextract.low.u32 %v449
    %v451 = vextract.high.u32 %v449
    %v452 = vmul.u32.u64.compose %v448, %v443
    %v453 = vextract.low.u32 %v452
    %v454 = vextract.high.u32 %v452
    %v455 = vmul.u32 %v448, %v439
    %v456 = vadd.s32 %v451, %v453
    %vm457 = vc.u32 %v451, %v453
    %v458 = vadd.s32 %v454, 1
    %v459 = vsel %vm457, %v458, %v454
    %v460 = vadd.s32 %v455, %v459
    %v461 = vadd.s32 %v460, 536870912
    %v462 = vshrl.u32 %v461, 30
    %v463 = vshll.u32 %v462, 30
    %v464 = vsub.s32 %v460, %v463
    %vm465 = vcmp.lt.s32.totalorder %v464, 0
    %v466 = vsub.s32 0, %v464
    %v467 = vsel %vm465, %v466, %v464
    %v468 = vclz %v467
    %v469 = vsub.s32 %v468, 2
    %vm470 = vcmp.gt.s32.totalorder 0, %v469
    %v471 = vsel %vm470, 0, %v469
    %v472 = vsub.s32 32, %v471
    %v473 = vshll.u32 %v464, %v471
    %v474 = vshrl.u32 %v456, %v472
    %v475 = vor.u32 %v473, %v474
    %v476 = vsub.s32 4294967266, %v471
    %v477 = vadd.s32 %v476, 127
    %v478 = vshll.u32 %v477, 23
    %v479 = vor.u32 4788187, %v478
    %v480 = vand.u32 2147483647, %v479
    %v482 = vcvt.s32.f32 %v475
    %v483 = vmul.f32 %v482, %v480
    %v484 = vxor.u32 %v483, 2147483648
    %v485 = vsel %vm402, %v484, %v483
    %v486 = vsub.s32 4, %v462
    %v487 = vsel %vm402, %v486, %v462
    %v488 = vsel %vm401, %v87, %v485
    %v489 = vsel %vm401, 0, %v487
    %v490 = vcosq.f32.pop %v488
    %v491 = vsinq.f32.pop %v488
    %vm492 = vweird.f32 %v87
    %v493 = vadd.s32 %v489, 3
    %v494 = vand.u32 %v493, 3
    %vm495 = vcmp.lt.s32.totalorder %v494, 2
    %vm496 = vcmp.eq.s32.totalorder %v494, 0
    %v497 = vxor.u32 %v491, 2147483648
    %v498 = vsel %vm496, %v490, %v497
    %vm499 = vcmp.eq.s32.totalorder %v494, 2
    %v500 = vxor.u32 %v490, 2147483648
    %v501 = vsel %vm499, %v500, %v491
    %v502 = vsel %vm495, %v498, %v501
    %v503 = vsel %vm492, nan, %v502
    %504 = vst [vmem:[#allocation2] sm:$0xff] %v191
    %505 = vst [vmem:[#allocation2 + $0x8] sm:$0xff] %v295
    %506 = vst [vmem:[#allocation2 + $0x10] sm:$0xff] %v399
    %507 = vst [vmem:[#allocation2 + $0x18] sm:$0x1] %v503
    // Predicated region
    $region14: #{tpu_custom_call.1} parent=1 // pred_check
      _
    $region15: #{tpu_custom_call.1} parent=1 // pred_check_branch
      %509 = sbr.rel (0) target = $region17
    $region16: #{tpu_custom_call.1} parent=1 // pred_region
      %s511 = ssub.s32 512, 512
      %512 = vsyncadd [#allocation3], %s511
      %s513 = sshll.u32 [#allocation2], 4
      %s514 = int_to_ptr.vmem [resolvable:$true] %s513
      %519 = dma.vmem_to_hbm [thread:$0]  %s514, 512, %s3, [#allocation3], 128, 128, 8
    $region17: #{tpu_custom_call.1} parent=1 // pred_fallthru
      _
    // Predicated region
    $region18: #{tpu_custom_call.1} parent=1 // pred_check
      _
    $region19: #{tpu_custom_call.1} parent=1 // pred_check_branch
      %521 = sbr.rel (0) target = $region21
    $region20: #{tpu_custom_call.1} parent=1 // pred_region
      %522 = dma.done [#allocation3], 512
    $region21: #{tpu_custom_call.1} parent=1 // pred_fallthru
      _
    %523 = vsyncpa [#allocation3], 1

</llo_original>
